<compile_context>
chip_gen: v7x
topology: tpu7x:2x2x1
jax: 0.10.0
libtpu: 0.0.40
codegen_flags: <defaults>
</compile_context>

<pallas_src>
import functools

import numpy as np
import jax
import jax.numpy as jnp
from jax.experimental import pallas as pl
from jax.experimental.pallas import tpu as pltpu


# ----------------------------- small helpers -----------------------------

def _round_up(x: int, m: int) -> int:
    return ((x + m - 1) // m) * m


def _hann_window_periodic(win_length: int) -> np.ndarray:
    # librosa.filters.get_window('hann', win_length, fftbins=True)
    n = np.arange(win_length)
    return 0.5 - 0.5 * np.cos(2.0 * np.pi * n / win_length)


# ----------------------------- parameter construction (cached) -----------------------------

@functools.lru_cache(maxsize=None)
def _fused_dft_weight_T(n_fft: int, win_length: int):
    """Fused, transposed, sublane-padded DFT weight.

    Returns a device array of shape (n_out_pad8, n_fft), float32, where
      rows [0, F)        = real part of (windowed DFT)^T
      rows [F, 2F)       = imag part
      rows [2F, n_out_pad8) = zero padding (sublane alignment, F = n_fft//2 + 1).

    Equivalent to the PyTorch conv_real/conv_imag weights of the STFT module.
    """
    out_channels = n_fft // 2 + 1
    n_out_pad8 = _round_up(2 * out_channels, 8)

    window = _hann_window_periodic(win_length)
    if win_length < n_fft:  # librosa.util.pad_center
        lpad = (n_fft - win_length) // 2
        window = np.pad(window, (lpad, n_fft - win_length - lpad))

    k = np.arange(n_fft)
    f = np.arange(out_channels)
    # exp form == np.power(omega, k*f) mathematically, but better conditioned for large n_fft
    W = np.exp(-2j * np.pi * np.outer(k, f) / n_fft)          # (n_fft, out_channels)
    WW = W * window[:, None]

    w = np.zeros((n_out_pad8, n_fft), dtype=np.float32)
    w[:out_channels, :] = np.real(WW).T.astype(np.float32)
    w[out_channels:2 * out_channels, :] = np.imag(WW).T.astype(np.float32)
    return jnp.asarray(w)                                      # cached device constant


# ----------------------------- Pallas kernel -----------------------------

def _stft_fused_kernel(w_ref, f_ref, o_ref):
    # (n_out_pad8, n_fft) @ (n_fft, row_tile) -> (n_out_pad8, row_tile)
    # Both the frames input and the output are lane-dense (row_tile is a multiple of 128).
    o_ref[...] = jnp.dot(w_ref[...], f_ref[...], preferred_element_type=jnp.float32)


# ----------------------------- forward wrapper -----------------------------

@functools.partial(
    jax.jit,
    static_argnames=("n_fft", "hop_length", "win_length", "center", "pad_mode"),
)
def stft_forward(x, *, n_fft=2048, hop_length=None, win_length=None,
                 center=True, pad_mode="reflect"):
    """x: (batch, data_length) float32.
    Returns (real, imag), each (batch, 1, time_steps, n_fft//2 + 1)."""
    if win_length is None:
        win_length = n_fft
    if hop_length is None:
        hop_length = win_length // 4

    batch, _ = x.shape
    out_channels = n_fft // 2 + 1
    n_out_pad8 = _round_up(2 * out_channels, 8)

    x = x.astype(jnp.float32)

    # --- glue: center padding (matches F.pad reflect/constant) ---
    if center:
        mode = "reflect" if pad_mode == "reflect" else "constant"
        x = jnp.pad(x, ((0, 0), (n_fft // 2, n_fft // 2)), mode=mode)

    padded_len = x.shape[1]
    time_steps = (padded_len - n_fft) // hop_length + 1
    rows = batch * time_steps

    # --- glue: TRANSPOSED frame extraction: frames_T[k, b*T + t] = x[b, t*hop + k] ---
    # Keeping `rows` on the last (lane) axis makes the kernel input lane-dense.
    # TODO(synk): frame extraction still runs as an XLA gather (hop < n_fft means
    # ~n_fft/hop x redundant HBM reads); an in-kernel framing path (contiguous signal
    # DMA + in-VMEM unfold) would cut input traffic further.
    idx = jnp.arange(n_fft)[:, None] + hop_length * jnp.arange(time_steps)[None, :]
    frames_T = x[:, idx]                                       # (batch, n_fft, T)
    frames_T = jnp.transpose(frames_T, (1, 0, 2)).reshape(n_fft, rows)

    # --- pad rows to a multiple of the row tile (tile is a multiple of 128) ---
    row_tile = min(512, _round_up(rows, 128))
    rows_padded = _round_up(rows, row_tile)
    if rows_padded != rows:
        frames_T = jnp.pad(frames_T, ((0, 0), (0, rows_padded - rows)))
    num_tiles = rows_padded // row_tile

    w = _fused_dft_weight_T(n_fft, win_length)                 # (n_out_pad8, n_fft), resident

    # TODO(synk): for very large n_fft (>= ~1024) the resident fused weight should be
    # K-tiled (accumulator scratch + pl.when init/finalize) to respect small scoped VMEM.

    cost = pl.CostEstimate(
        flops=2 * n_out_pad8 * n_fft * rows_padded,
        transcendentals=0,
        bytes_accessed=4 * (n_fft * rows_padded            # frames in
                            + n_out_pad8 * n_fft           # weights in
                            + n_out_pad8 * rows_padded),   # fused output
    )

    out_T = pl.pallas_call(
        _stft_fused_kernel,
        out_shape=jax.ShapeDtypeStruct((n_out_pad8, rows_padded), jnp.float32),
        grid=(num_tiles,),
        in_specs=[
            pl.BlockSpec((n_out_pad8, n_fft), lambda i: (0, 0)),   # weights: VMEM-resident
            pl.BlockSpec((n_fft, row_tile), lambda i: (0, i)),     # frames tile (lane-dense)
        ],
        out_specs=pl.BlockSpec((n_out_pad8, row_tile), lambda i: (0, i)),
        compiler_params=pltpu.CompilerParams(
            dimension_semantics=("parallel",)),                    # megacore-shardable on v7x
        cost_estimate=cost,
    )(w, frames_T)

    # --- glue: trim padding, un-transpose, split real/imag, match PyTorch layout ---
    res = out_T[:, :rows].T.reshape(batch, time_steps, n_out_pad8)
    real = res[..., :out_channels][:, None, :, :]
    imag = res[..., out_channels:2 * out_channels][:, None, :, :]
    return real, imag


# ----------------------------- reference (plain JAX, independent weights) -----------------------------

def stft_reference(x, *, n_fft=2048, hop_length=None, win_length=None,
                   center=True, pad_mode="reflect"):
    if win_length is None:
        win_length = n_fft
    if hop_length is None:
        hop_length = win_length // 4
    batch, _ = x.shape
    out_channels = n_fft // 2 + 1
    if center:
        mode = "reflect" if pad_mode == "reflect" else "constant"
        x = jnp.pad(x, ((0, 0), (n_fft // 2, n_fft // 2)), mode=mode)
    time_steps = (x.shape[1] - n_fft) // hop_length + 1
    idx = hop_length * jnp.arange(time_steps)[:, None] + jnp.arange(n_fft)[None, :]
    frames = x[:, idx]                                          # (batch, T, n_fft)

    # Build weights exactly as the PyTorch module does (np.power DFT form).
    window = _hann_window_periodic(win_length)
    if win_length < n_fft:
        lpad = (n_fft - win_length) // 2
        window = np.pad(window, (lpad, n_fft - win_length - lpad))
    gx, gy = np.meshgrid(np.arange(n_fft), np.arange(n_fft))
    W = np.power(np.exp(-2 * np.pi * 1j / n_fft), gx * gy)
    WW = W[:, :out_channels] * window[:, None]
    wr = jnp.asarray(np.real(WW).astype(np.float32))
    wi = jnp.asarray(np.imag(WW).astype(np.float32))

    real = jnp.einsum("btk,kf->btf", frames, wr,
                      precision=jax.lax.Precision.HIGHEST)[:, None, :, :]
    imag = jnp.einsum("btk,kf->btf", frames, wi,
                      precision=jax.lax.Precision.HIGHEST)[:, None, :, :]
    return real, imag


if __name__ == "__main__":
    key = jax.random.PRNGKey(0)
    batch, data_length = 2, 4096
    n_fft, hop = 64, 16                     # small shapes; exercises a 2-tile grid + tail padding

    x = jax.random.normal(key, (batch, data_length), dtype=jnp.float32)

    real, imag = stft_forward(x, n_fft=n_fft, hop_length=hop)
    jax.block_until_ready((real, imag))

    real_ref, imag_ref = stft_reference(x, n_fft=n_fft, hop_length=hop)
    time_steps = data_length // hop + 1
    assert real.shape == imag.shape == (batch, 1, time_steps, n_fft // 2 + 1)
    np.testing.assert_allclose(np.asarray(real), np.asarray(real_ref), rtol=1e-4, atol=1e-4)
    np.testing.assert_allclose(np.asarray(imag), np.asarray(imag_ref), rtol=1e-4, atol=1e-4)

    print("KERNEL_OK")
</pallas_src>

<mosaic_0001>
module attributes {stable_mosaic.version = 11 : i64} {
  func.func @_stft_fused_kernel(%arg0: i32, %arg1: memref<72x64xf32, #tpu.memory_space<vmem>>, %arg2: memref<64x512xf32, #tpu.memory_space<vmem>>, %arg3: memref<72x512xf32, #tpu.memory_space<vmem>>) attributes {dimension_semantics = [#tpu.dimension_semantics<parallel>], iteration_bounds = array<i64: 2>, scalar_prefetch = 0 : i64, scratch_operands = 0 : i64, tpu.core_type = #tpu.core_type<tc>, window_params = [{pipeline_mode = #tpu.pipeline_mode<synchronous>, transform_indices = @transform_0, window_bounds = array<i64: 72, 64>}, {transform_indices = @transform_1, window_bounds = array<i64: 64, 512>}, {transform_indices = @transform_2, window_bounds = array<i64: 72, 512>}]} {
    %c0 = arith.constant 0 : index
    %c0_0 = arith.constant 0 : index
    %0 = vector.load %arg1[%c0, %c0_0] : memref<72x64xf32, #tpu.memory_space<vmem>>, vector<72x64xf32>
    %c0_1 = arith.constant 0 : index
    %c0_2 = arith.constant 0 : index
    %1 = vector.load %arg2[%c0_1, %c0_2] : memref<64x512xf32, #tpu.memory_space<vmem>>, vector<64x512xf32>
    %cst = arith.constant dense<0.000000e+00> : vector<72x512xf32>
    %2 = tpu.matmul %0, %1, %cst {dimension_numbers = #tpu.dot_dimension_numbers<[1], [0], [0], [1], [0, 0, 1, 1], [], []>} : vector<72x64xf32>, vector<64x512xf32>, vector<72x512xf32> -> vector<72x512xf32>
    %c0_3 = arith.constant 0 : index
    %c0_4 = arith.constant 0 : index
    %3 = vector.load %arg3[%c0_3, %c0_4] : memref<72x512xf32, #tpu.memory_space<vmem>>, vector<72x512xf32>
    tpu.vector_store %arg3[%c0_3, %c0_4], %2 {strides = array<i32>} : memref<72x512xf32, #tpu.memory_space<vmem>>, vector<72x512xf32>,
    return
  }
  func.func @transform_0(%arg0: i32) -> (i32, i32) {
    %c0_i32 = arith.constant 0 : i32
    %c0_i32_0 = arith.constant 0 : i32
    %c0_i32_1 = arith.constant 0 : i32
    return %c0_i32, %c0_i32_0 : i32, i32
  }
  func.func @transform_1(%arg0: i32) -> (i32, i32) {
    %c0_i32 = arith.constant 0 : i32
    %c0_i32_0 = arith.constant 0 : i32
    return %c0_i32, %arg0 : i32, i32
  }
  func.func @transform_2(%arg0: i32) -> (i32, i32) {
    %c0_i32 = arith.constant 0 : i32
    %c0_i32_0 = arith.constant 0 : i32
    return %c0_i32, %arg0 : i32, i32
  }
}

</mosaic_0001>

<llo_original>
// kernel: stft_forward.1
$region0: #{stft_forward.1}
  #allocation0 [shape = 'u32[]', space=smem, size = 0x4, offset = 0x4, fixed_abs, tag = 'smem constant byte address 0x4 - core index']
  #allocation1 [shape = 'u32[144,128]{1,0:T(1,128)}', space=vmem, size = 0x12000, scoped, tag = 'internal scratch']
  %s0 = inlined_call_operand.vmem [shape: f32[72,64], index: 0, kind: input, shape index: {}]
  %s1 = inlined_call_operand.vmem [shape: f32[64,1024], index: 1, kind: input, shape index: {}]
  %s2 = inlined_call_operand.vmem [shape: f32[72,1024], index: 2, kind: output, shape index: {}]
  %s3 = sld [smem:[#allocation0]]
  $region83: #{stft_forward.1} parent=0
    _
  %s5 = ssub.s32 1, %s3
  %s6 = scalar_select 0, %s5, %s3
  $region1: #{stft_forward.1} parent=0
    #allocation2 [shape = 'u8[262144]{0}', space=vmem, size = 0x40000, scoped, tag = 'input window, operand 1']
    #allocation3 [shape = 'u8[294912]{0}', space=vmem, size = 0x48000, scoped, tag = 'output window, operand 0']
    loop: start=0, step=1, limit=4
    $region2: #{stft_forward.1} parent=1 // loop_pre_header
      _
    $region3: #{stft_forward.1} parent=1 // loop_header
      %s8 = sphi 0, %s12
      %p9 = scmp.ge.s32.totalorder %s8, 4
      %s16 = sphi 0, %s16
      %s18 = sphi 0, %s16
      %s19 = sphi 0, %s18
      %s33 = sphi 0, %s19
      %s39 = sphi 0, %s41
      %s42 = sphi 0, %s39
      %s43 = sphi 0, %s42
      %s59 = sphi 0, %s43
      %s65 = sphi 0, %s67
      %s68 = sphi 0, %s65
      %s69 = sphi 0, %s68
      %s85 = sphi 0, %s69
    $region4: #{stft_forward.1} parent=1 // loop_header_branch
      %11 = sbr.rel (%p9) target = $region8
    $region5: #{stft_forward.1} parent=1 // loop_body
      %s13 = ssub.s32 %s8, 1
      %s14 = ssub.s32 %s8, 2
      %s15 = sadd.s32 %s8, 1
      %s17 = sadd.s32 %s16, 1
      %p20 = scmp.eq.s32.totalorder %s8, 1
      %p21 = scmp.ne.s32.totalorder %s16, %s18
      %p22 = scmp.eq.s32.totalorder %s8, 0
      %p23 = por %p21, %p22
      %p24 = scmp.ne.s32.totalorder %s16, %s18
      %p25 = scmp.eq.s32.totalorder %s13, 1
      %p26 = por %p24, %p25
      %p27 = scmp.ne.s32.totalorder %s18, %s19
      %p28 = scmp.eq.s32.totalorder %s13, 0
      %p29 = por %p27, %p28
      %p30 = scmp.ne.s32.totalorder %s18, %s19
      %p31 = scmp.eq.s32.totalorder %s14, 1
      %p32 = por %p30, %p31
      %p34 = scmp.ne.s32.totalorder %s19, %s33
      %p35 = scmp.eq.s32.totalorder %s14, 0
      %p36 = por %p34, %p35
      %s37 = ssub.s32 %s8, %s15
      %p38 = scmp.eq.s32.totalorder %s37, 0
      %s40 = sadd.s32 %s39, 1
      %s41 = scalar_select %p38, %s39, %s40
      %p44 = pneg %p38
      %p45 = scmp.eq.s32.totalorder %s8, 1
      %p46 = por %p44, %p45
      %p47 = scmp.ne.s32.totalorder %s39, %s42
      %p48 = scmp.eq.s32.totalorder %s8, 0
      %p49 = por %p47, %p48
      %p50 = scmp.ne.s32.totalorder %s39, %s42
      %p51 = scmp.eq.s32.totalorder %s13, 1
      %p52 = por %p50, %p51
      %p53 = scmp.ne.s32.totalorder %s42, %s43
      %p54 = scmp.eq.s32.totalorder %s13, 0
      %p55 = por %p53, %p54
      %p56 = scmp.ne.s32.totalorder %s42, %s43
      %p57 = scmp.eq.s32.totalorder %s14, 1
      %p58 = por %p56, %p57
      %p60 = scmp.ne.s32.totalorder %s43, %s59
      %p61 = scmp.eq.s32.totalorder %s14, 0
      %p62 = por %p60, %p61
      %s63 = ssub.s32 %s8, %s15
      %p64 = scmp.eq.s32.totalorder %s63, 0
      %s66 = sadd.s32 %s65, 1
      %s67 = scalar_select %p64, %s65, %s66
      %p70 = pneg %p64
      %p71 = scmp.eq.s32.totalorder %s8, 1
      %p72 = por %p70, %p71
      %p73 = scmp.ne.s32.totalorder %s65, %s68
      %p74 = scmp.eq.s32.totalorder %s8, 0
      %p75 = por %p73, %p74
      %p76 = scmp.ne.s32.totalorder %s65, %s68
      %p77 = scmp.eq.s32.totalorder %s13, 1
      %p78 = por %p76, %p77
      %p79 = scmp.ne.s32.totalorder %s68, %s69
      %p80 = scmp.eq.s32.totalorder %s13, 0
      %p81 = por %p79, %p80
      %p82 = scmp.ne.s32.totalorder %s68, %s69
      %p83 = scmp.eq.s32.totalorder %s14, 1
      %p84 = por %p82, %p83
      %p86 = scmp.ne.s32.totalorder %s69, %s85
      %p87 = scmp.eq.s32.totalorder %s14, 0
      %p88 = por %p86, %p87
      %p89 = scmp.le.s32.totalorder 1, %s8
      %p90 = scmp.lt.s32.totalorder %s8, 3
      %p91 = pnand %p89, %p90
      %p92 = pneg %p91
      // Predicated region
      $region9: #{stft_forward.1} parent=5 // pred_check
        _
      $region10: #{stft_forward.1} parent=5 // pred_check_branch
        %94 = sbr.rel (%p91) target = $region12
      $region11: #{stft_forward.1} parent=5 // pred_region
        %s95 = ssub.s32 %s8, 1
        // Predicated region
        $region13: #{stft_forward.1} parent=11 // pred_check
          %p96 = pneg %p29
        $region14: #{stft_forward.1} parent=11 // pred_check_branch
          %98 = sbr.rel (%p96) target = $region16
        $region15: #{stft_forward.1} parent=11 // pred_region
          _
        $region16: #{stft_forward.1} parent=11 // pred_fallthru
          _
      $region12: #{stft_forward.1} parent=5 // pred_fallthru
        _
      %p99 = scmp.lt.s32.totalorder %s8, 2
      // Predicated region
      $region17: #{stft_forward.1} parent=5 // pred_check
        %p100 = pneg %p99
      $region18: #{stft_forward.1} parent=5 // pred_check_branch
        %102 = sbr.rel (%p100) target = $region20
      $region19: #{stft_forward.1} parent=5 // pred_region
        // Predicated region
        $region21: #{stft_forward.1} parent=19 // pred_check
          %p103 = pneg %p49
        $region22: #{stft_forward.1} parent=19 // pred_check_branch
          %105 = sbr.rel (%p103) target = $region24
        $region23: #{stft_forward.1} parent=19 // pred_region
          %s106 = sand.u32 %s39, 1
          %s107 = sand.u32 %s39, 1
          %s108 = smul.addr %s107, 256
          %s109 = scalar_lea.vmem [#allocation2], %s108
          %s110 = smul.u32 4, %s8
          %s111 = smul.addr %s110, 8
          %s112 = scalar_lea.vmem %s1, %s111
          // Predicated region
          $region25: #{stft_forward.1} parent=23 // pred_check
            _
          $region26: #{stft_forward.1} parent=23 // pred_check_branch
            %114 = sbr.rel (0) target = $region28
          $region27: #{stft_forward.1} parent=23 // pred_region
            // Predicated region
            $region29: #{stft_forward.1} parent=27 // pred_check
              _
            $region30: #{stft_forward.1} parent=27 // pred_check_branch
              %116 = sbr.rel (0) target = $region32
            $region31: #{stft_forward.1} parent=27 // pred_region
              loop: start=0, step=1, limit=1
              $region33: #{stft_forward.1} parent=31 // loop_pre_header
                _
              $region34: #{stft_forward.1} parent=31 // loop_header
                %s118 = sphi 0, %s122
                %p119 = scmp.ge.s32.totalorder %s118, 1
                %s123 = sphi %s112, %s112
                %s124 = sphi %s109, %s109
              $region35: #{stft_forward.1} parent=31 // loop_header_branch
                %121 = sbr.rel (%p119) target = $region39
              $region36: #{stft_forward.1} parent=31 // loop_body
                %v125 = vld [vmem:[%s123] sm:$0xff]
                %126 = vst [vmem:[%s124] sm:$0xff] %v125
                %v127 = vld [vmem:[%s123 + $0x8] sm:$0xff]
                %128 = vst [vmem:[%s124 + $0x8] sm:$0xff] %v127
                %v129 = vld [vmem:[%s123 + $0x10] sm:$0xff]
                %130 = vst [vmem:[%s124 + $0x10] sm:$0xff] %v129
                %v131 = vld [vmem:[%s123 + $0x18] sm:$0xff]
                %132 = vst [vmem:[%s124 + $0x18] sm:$0xff] %v131
                %v133 = vld [vmem:[%s123 + $0x40] sm:$0xff]
                %134 = vst [vmem:[%s124 + $0x20] sm:$0xff] %v133
                %v135 = vld [vmem:[%s123 + $0x48] sm:$0xff]
                %136 = vst [vmem:[%s124 + $0x28] sm:$0xff] %v135
                %v137 = vld [vmem:[%s123 + $0x50] sm:$0xff]
                %138 = vst [vmem:[%s124 + $0x30] sm:$0xff] %v137
                %v139 = vld [vmem:[%s123 + $0x58] sm:$0xff]
                %140 = vst [vmem:[%s124 + $0x38] sm:$0xff] %v139
                %v141 = vld [vmem:[%s123 + $0x80] sm:$0xff]
                %142 = vst [vmem:[%s124 + $0x40] sm:$0xff] %v141
                %v143 = vld [vmem:[%s123 + $0x88] sm:$0xff]
                %144 = vst [vmem:[%s124 + $0x48] sm:$0xff] %v143
                %v145 = vld [vmem:[%s123 + $0x90] sm:$0xff]
                %146 = vst [vmem:[%s124 + $0x50] sm:$0xff] %v145
                %v147 = vld [vmem:[%s123 + $0x98] sm:$0xff]
                %148 = vst [vmem:[%s124 + $0x58] sm:$0xff] %v147
                %v149 = vld [vmem:[%s123 + $0xc0] sm:$0xff]
                %150 = vst [vmem:[%s124 + $0x60] sm:$0xff] %v149
                %v151 = vld [vmem:[%s123 + $0xc8] sm:$0xff]
                %152 = vst [vmem:[%s124 + $0x68] sm:$0xff] %v151
                %v153 = vld [vmem:[%s123 + $0xd0] sm:$0xff]
                %154 = vst [vmem:[%s124 + $0x70] sm:$0xff] %v153
                %v155 = vld [vmem:[%s123 + $0xd8] sm:$0xff]
                %156 = vst [vmem:[%s124 + $0x78] sm:$0xff] %v155
                %v157 = vld [vmem:[%s123 + $0x100] sm:$0xff]
                %158 = vst [vmem:[%s124 + $0x80] sm:$0xff] %v157
                %v159 = vld [vmem:[%s123 + $0x108] sm:$0xff]
                %160 = vst [vmem:[%s124 + $0x88] sm:$0xff] %v159
                %v161 = vld [vmem:[%s123 + $0x110] sm:$0xff]
                %162 = vst [vmem:[%s124 + $0x90] sm:$0xff] %v161
                %v163 = vld [vmem:[%s123 + $0x118] sm:$0xff]
                %164 = vst [vmem:[%s124 + $0x98] sm:$0xff] %v163
                %v165 = vld [vmem:[%s123 + $0x140] sm:$0xff]
                %166 = vst [vmem:[%s124 + $0xa0] sm:$0xff] %v165
                %v167 = vld [vmem:[%s123 + $0x148] sm:$0xff]
                %168 = vst [vmem:[%s124 + $0xa8] sm:$0xff] %v167
                %v169 = vld [vmem:[%s123 + $0x150] sm:$0xff]
                %170 = vst [vmem:[%s124 + $0xb0] sm:$0xff] %v169
                %v171 = vld [vmem:[%s123 + $0x158] sm:$0xff]
                %172 = vst [vmem:[%s124 + $0xb8] sm:$0xff] %v171
                %v173 = vld [vmem:[%s123 + $0x180] sm:$0xff]
                %174 = vst [vmem:[%s124 + $0xc0] sm:$0xff] %v173
                %v175 = vld [vmem:[%s123 + $0x188] sm:$0xff]
                %176 = vst [vmem:[%s124 + $0xc8] sm:$0xff] %v175
                %v177 = vld [vmem:[%s123 + $0x190] sm:$0xff]
                %178 = vst [vmem:[%s124 + $0xd0] sm:$0xff] %v177
                %v179 = vld [vmem:[%s123 + $0x198] sm:$0xff]
                %180 = vst [vmem:[%s124 + $0xd8] sm:$0xff] %v179
                %v181 = vld [vmem:[%s123 + $0x1c0] sm:$0xff]
                %182 = vst [vmem:[%s124 + $0xe0] sm:$0xff] %v181
                %v183 = vld [vmem:[%s123 + $0x1c8] sm:$0xff]
                %184 = vst [vmem:[%s124 + $0xe8] sm:$0xff] %v183
                %v185 = vld [vmem:[%s123 + $0x1d0] sm:$0xff]
                %186 = vst [vmem:[%s124 + $0xf0] sm:$0xff] %v185
                %v187 = vld [vmem:[%s123 + $0x1d8] sm:$0xff]
                %188 = vst [vmem:[%s124 + $0xf8] sm:$0xff] %v187
              $region37: #{stft_forward.1} parent=31 // loop_footer
                %s122 = sadd.s32 1, %s118
              $region38: #{stft_forward.1} parent=31 // loop_footer_branch
                %117 = sbr.rel target = $region34
              $region39: #{stft_forward.1} parent=31 // loop_exit
                _
            $region32: #{stft_forward.1} parent=27 // pred_fallthru
              _
            // Predicated region
            $region40: #{stft_forward.1} parent=27 // pred_check
              _
            $region41: #{stft_forward.1} parent=27 // pred_check_branch
              %190 = sbr.rel target = $region43
            $region42: #{stft_forward.1} parent=27 // pred_region
              _
            $region43: #{stft_forward.1} parent=27 // pred_fallthru
              _
          $region28: #{stft_forward.1} parent=23 // pred_fallthru
            _
          %191 = vnop
        $region24: #{stft_forward.1} parent=19 // pred_fallthru
          _
      $region20: #{stft_forward.1} parent=5 // pred_fallthru
        _
      %p192 = scmp.le.s32.totalorder 1, %s8
      %p193 = scmp.lt.s32.totalorder %s8, 3
      %p194 = pnand %p192, %p193
      %p195 = pneg %p194
      // Predicated region
      $region44: #{stft_forward.1} parent=5 // pred_check
        _
      $region45: #{stft_forward.1} parent=5 // pred_check_branch
        %197 = sbr.rel (%p194) target = $region47
      $region46: #{stft_forward.1} parent=5 // pred_region
        %s198 = ssub.s32 %s8, 1
        %s199 = sand.u32 %s42, 1
        %s200 = sand.u32 %s42, 1
        %s201 = smul.addr %s200, 256
        %s202 = scalar_lea.vmem [#allocation2], %s201
        // Predicated region
        $region48: #{stft_forward.1} parent=46 // pred_check
          %p203 = pneg %p55
        $region49: #{stft_forward.1} parent=46 // pred_check_branch
          %205 = sbr.rel (%p203) target = $region51
        $region50: #{stft_forward.1} parent=46 // pred_region
          _
        $region51: #{stft_forward.1} parent=46 // pred_fallthru
          _
        %p206 = pneg %p29
        %p207 = pneg %p26
        %s208 = sand.u32 %s42, 1
        %s209 = sand.u32 %s42, 1
        %s210 = smul.addr %s209, 256
        %s211 = scalar_lea.vmem [#allocation2], %s210
        %p212 = pneg %p55
        %p213 = pneg %p52
        %p214 = pneg %p81
        %p215 = pneg %p78
        %s216 = sand.u32 %s68, 1
        %s217 = sand.u32 %s68, 1
        %s218 = smul.addr %s217, 288
        %s219 = scalar_lea.vmem [#allocation3], %s218
        %s220 = smul.u32 4, %s13
        %s221 = smul.u32 4, %s13
        %v222 = vld [vmem:[%s0] sm:$0xff]
        %v223 = vld [vmem:[%s0 + $0x8] sm:$0xff]
        %v224 = vld [vmem:[%s0 + $0x10] sm:$0xff]
        %v225 = vld [vmem:[%s0 + $0x18] sm:$0xff]
        %v226 = vld [vmem:[%s0 + $0x20] sm:$0xff]
        %v227 = vld [vmem:[%s0 + $0x28] sm:$0xff]
        %v228 = vld [vmem:[%s0 + $0x30] sm:$0xff]
        %v229 = vld [vmem:[%s0 + $0x38] sm:$0xff]
        %v230 = vld [vmem:[%s0 + $0x40] sm:$0xff]
        %v231 = vld [vmem:[%s202] sm:$0xff]
        %v232 = vld [vmem:[%s202 + $0x8] sm:$0xff]
        %v233 = vld [vmem:[%s202 + $0x10] sm:$0xff]
        %v234 = vld [vmem:[%s202 + $0x18] sm:$0xff]
        %v235 = vld [vmem:[%s202 + $0x20] sm:$0xff]
        %v236 = vld [vmem:[%s202 + $0x28] sm:$0xff]
        %v237 = vld [vmem:[%s202 + $0x30] sm:$0xff]
        %v238 = vld [vmem:[%s202 + $0x38] sm:$0xff]
        %v239 = vld [vmem:[%s202 + $0x40] sm:$0xff]
        %v240 = vld [vmem:[%s202 + $0x48] sm:$0xff]
        %v241 = vld [vmem:[%s202 + $0x50] sm:$0xff]
        %v242 = vld [vmem:[%s202 + $0x58] sm:$0xff]
        %v243 = vld [vmem:[%s202 + $0x60] sm:$0xff]
        %v244 = vld [vmem:[%s202 + $0x68] sm:$0xff]
        %v245 = vld [vmem:[%s202 + $0x70] sm:$0xff]
        %v246 = vld [vmem:[%s202 + $0x78] sm:$0xff]
        %v247 = vld [vmem:[%s202 + $0x80] sm:$0xff]
        %v248 = vld [vmem:[%s202 + $0x88] sm:$0xff]
        %v249 = vld [vmem:[%s202 + $0x90] sm:$0xff]
        %v250 = vld [vmem:[%s202 + $0x98] sm:$0xff]
        %v251 = vld [vmem:[%s202 + $0xa0] sm:$0xff]
        %v252 = vld [vmem:[%s202 + $0xa8] sm:$0xff]
        %v253 = vld [vmem:[%s202 + $0xb0] sm:$0xff]
        %v254 = vld [vmem:[%s202 + $0xb8] sm:$0xff]
        %v255 = vld [vmem:[%s202 + $0xc0] sm:$0xff]
        %v256 = vld [vmem:[%s202 + $0xc8] sm:$0xff]
        %v257 = vld [vmem:[%s202 + $0xd0] sm:$0xff]
        %v258 = vld [vmem:[%s202 + $0xd8] sm:$0xff]
        %v259 = vld [vmem:[%s202 + $0xe0] sm:$0xff]
        %v260 = vld [vmem:[%s202 + $0xe8] sm:$0xff]
        %v261 = vld [vmem:[%s202 + $0xf0] sm:$0xff]
        %v262 = vld [vmem:[%s202 + $0xf8] sm:$0xff]
        %vm263 = vcmask 523264
        %v265 = vsel %vm263, %v222, 0
        %v268 = vsel %vm263, %v223, 0
        %v271 = vsel %vm263, %v224, 0
        %v274 = vsel %vm263, %v225, 0
        %v277 = vsel %vm263, %v226, 0
        %v280 = vsel %vm263, %v227, 0
        %v283 = vsel %vm263, %v228, 0
        %v286 = vsel %vm263, %v229, 0
        %v289 = vsel %vm263, %v230, 0
        %291 = vmatprep.subr.mxu0 %v232
        %292 = vmatpush1.msra.mxu0 %v231
        %293 = vmatprep.subr.mxu0 %v236
        %294 = vmatpush1.msra.mxu0 %v235
        %295 = vmatprep.subr.mxu0 %v240
        %296 = vmatpush1.msra.mxu0 %v239
        %297 = vmatprep.subr.mxu0 %v244
        %298 = vmatpush1.msra.mxu0 %v243
        %299 = vmatprep.subr.mxu0 %v248
        %300 = vmatpush1.msra.mxu0 %v247
        %301 = vmatprep.subr.mxu0 %v252
        %302 = vmatpush1.msra.mxu0 %v251
        %303 = vmatprep.subr.mxu0 %v256
        %304 = vmatpush1.msra.mxu0 %v255
        %305 = vmatprep.subr.mxu0 %v260
        %306 = vmatpush1.msra.mxu0 %v259
        %307 = vmatprep.subr.mxu0 0.0
        %308 = vmatpush1.msra.mxu0 0.0
        %309 = vmatprep.subr.mxu0 0.0
        %310 = vmatpush1.msra.mxu0 0.0
        %311 = vmatprep.subr.mxu0 0.0
        %312 = vmatpush1.msra.mxu0 0.0
        %313 = vmatprep.subr.mxu0 0.0
        %314 = vmatpush1.msra.mxu0 0.0
        %315 = vmatprep.subr.mxu0 0.0
        %316 = vmatpush1.msra.mxu0 0.0
        %317 = vmatprep.subr.mxu0 0.0
        %318 = vmatpush1.msra.mxu0 0.0
        %319 = vmatprep.subr.mxu0 0.0
        %320 = vmatpush1.msra.mxu0 0.0
        %321 = vmatprep.subr.mxu0 0.0
        %322 = vmatpush1.msra.mxu0 0.0
        %323 = vmatprep.subr.mxu0 0.0
        %324 = vmatpush1.msra.mxu0 0.0
        %325 = vmatprep.subr.mxu0 0.0
        %326 = vmatpush1.msra.mxu0 0.0
        %327 = vmatprep.subr.mxu0 0.0
        %328 = vmatpush1.msra.mxu0 0.0
        %329 = vmatprep.subr.mxu0 0.0
        %330 = vmatpush1.msra.mxu0 0.0
        %331 = vmatprep.subr.mxu0 0.0
        %332 = vmatpush1.msra.mxu0 0.0
        %333 = vmatprep.subr.mxu0 0.0
        %334 = vmatpush1.msra.mxu0 0.0
        %335 = vmatprep.subr.mxu0 0.0
        %336 = vmatpush1.msra.mxu0 0.0
        %337 = vmatprep.subr.mxu0 0.0
        %338 = vmatpush1.msra.mxu0 0.0
        %339 = vmatprep.subr.mxu0 0.0
        %340 = vmatpush1.msra.mxu0 0.0
        %341 = vmatprep.subr.mxu0 0.0
        %342 = vmatpush1.msra.mxu0 0.0
        %343 = vmatprep.subr.mxu0 0.0
        %344 = vmatpush1.msra.mxu0 0.0
        %345 = vmatprep.subr.mxu0 0.0
        %346 = vmatpush1.msra.mxu0 0.0
        %347 = vmatprep.subr.mxu0 0.0
        %348 = vmatpush1.msra.mxu0 0.0
        %349 = vmatprep.subr.mxu0 0.0
        %350 = vmatpush1.msra.mxu0 0.0
        %351 = vmatprep.subr.mxu0 0.0
        %352 = vmatpush1.msra.mxu0 0.0
        %353 = vmatprep.subr.mxu0 0.0
        %354 = vmatpush1.msra.mxu0 0.0
        %355 = vmatprep.mubr.f32.mxu0 0.0
        %356 = vmatmul.mubr.f32.gmra.mrb[0].mxu0 %v265
        %v357 = vpop.f32.mrb[0].mxu0
        %v358 = vadd.f32 0.0, %v357
        %v359 = vpop.f32.mrb[0].mxu0
        %v360 = vadd.f32 0.0, %v359
        %361 = vmatprep.mubr.f32.mxu0 0.0
        %362 = vmatmul.mubr.f32.gmra.mrb[0].mxu0 %v268
        %v363 = vpop.f32.mrb[0].mxu0
        %v364 = vadd.f32 0.0, %v363
        %v365 = vpop.f32.mrb[0].mxu0
        %v366 = vadd.f32 0.0, %v365
        %367 = vmatprep.mubr.f32.mxu0 0.0
        %368 = vmatmul.mubr.f32.gmra.mrb[0].mxu0 %v271
        %v369 = vpop.f32.mrb[0].mxu0
        %v370 = vadd.f32 0.0, %v369
        %v371 = vpop.f32.mrb[0].mxu0
        %v372 = vadd.f32 0.0, %v371
        %373 = vmatprep.mubr.f32.mxu0 0.0
        %374 = vmatmul.mubr.f32.gmra.mrb[0].mxu0 %v274
        %v375 = vpop.f32.mrb[0].mxu0
        %v376 = vadd.f32 0.0, %v375
        %v377 = vpop.f32.mrb[0].mxu0
        %v378 = vadd.f32 0.0, %v377
        %379 = vmatprep.mubr.f32.mxu0 0.0
        %380 = vmatmul.mubr.f32.gmra.mrb[0].mxu0 %v277
        %v381 = vpop.f32.mrb[0].mxu0
        %v382 = vadd.f32 0.0, %v381
        %v383 = vpop.f32.mrb[0].mxu0
        %v384 = vadd.f32 0.0, %v383
        %385 = vmatprep.mubr.f32.mxu0 0.0
        %386 = vmatmul.mubr.f32.gmra.mrb[0].mxu0 %v280
        %v387 = vpop.f32.mrb[0].mxu0
        %v388 = vadd.f32 0.0, %v387
        %v389 = vpop.f32.mrb[0].mxu0
        %v390 = vadd.f32 0.0, %v389
        %391 = vmatprep.mubr.f32.mxu0 0.0
        %392 = vmatmul.mubr.f32.gmra.mrb[0].mxu0 %v283
        %v393 = vpop.f32.mrb[0].mxu0
        %v394 = vadd.f32 0.0, %v393
        %v395 = vpop.f32.mrb[0].mxu0
        %v396 = vadd.f32 0.0, %v395
        %397 = vmatprep.mubr.f32.mxu0 0.0
        %398 = vmatmul.mubr.f32.gmra.mrb[0].mxu0 %v286
        %v399 = vpop.f32.mrb[0].mxu0
        %v400 = vadd.f32 0.0, %v399
        %v401 = vpop.f32.mrb[0].mxu0
        %v402 = vadd.f32 0.0, %v401
        %403 = vmatprep.mubr.f32.mxu0 0.0
        %404 = vmatmul.mubr.f32.gmra.mrb[0].mxu0 %v289
        %v405 = vpop.f32.mrb[0].mxu0
        %v406 = vadd.f32 0.0, %v405
        %v407 = vpop.f32.mrb[0].mxu0
        %v408 = vadd.f32 0.0, %v407
        %409 = vdwg.mxu0
        %410 = vmatprep.subr.mxu0 %v234
        %411 = vmatpush1.msra.mxu0 %v233
        %412 = vmatprep.subr.mxu0 %v238
        %413 = vmatpush1.msra.mxu0 %v237
        %414 = vmatprep.subr.mxu0 %v242
        %415 = vmatpush1.msra.mxu0 %v241
        %416 = vmatprep.subr.mxu0 %v246
        %417 = vmatpush1.msra.mxu0 %v245
        %418 = vmatprep.subr.mxu0 %v250
        %419 = vmatpush1.msra.mxu0 %v249
        %420 = vmatprep.subr.mxu0 %v254
        %421 = vmatpush1.msra.mxu0 %v253
        %422 = vmatprep.subr.mxu0 %v258
        %423 = vmatpush1.msra.mxu0 %v257
        %424 = vmatprep.subr.mxu0 %v262
        %425 = vmatpush1.msra.mxu0 %v261
        %426 = vmatprep.subr.mxu0 0.0
        %427 = vmatpush1.msra.mxu0 0.0
        %428 = vmatprep.subr.mxu0 0.0
        %429 = vmatpush1.msra.mxu0 0.0
        %430 = vmatprep.subr.mxu0 0.0
        %431 = vmatpush1.msra.mxu0 0.0
        %432 = vmatprep.subr.mxu0 0.0
        %433 = vmatpush1.msra.mxu0 0.0
        %434 = vmatprep.subr.mxu0 0.0
        %435 = vmatpush1.msra.mxu0 0.0
        %436 = vmatprep.subr.mxu0 0.0
        %437 = vmatpush1.msra.mxu0 0.0
        %438 = vmatprep.subr.mxu0 0.0
        %439 = vmatpush1.msra.mxu0 0.0
        %440 = vmatprep.subr.mxu0 0.0
        %441 = vmatpush1.msra.mxu0 0.0
        %442 = vmatprep.subr.mxu0 0.0
        %443 = vmatpush1.msra.mxu0 0.0
        %444 = vmatprep.subr.mxu0 0.0
        %445 = vmatpush1.msra.mxu0 0.0
        %446 = vmatprep.subr.mxu0 0.0
        %447 = vmatpush1.msra.mxu0 0.0
        %448 = vmatprep.subr.mxu0 0.0
        %449 = vmatpush1.msra.mxu0 0.0
        %450 = vmatprep.subr.mxu0 0.0
        %451 = vmatpush1.msra.mxu0 0.0
        %452 = vmatprep.subr.mxu0 0.0
        %453 = vmatpush1.msra.mxu0 0.0
        %454 = vmatprep.subr.mxu0 0.0
        %455 = vmatpush1.msra.mxu0 0.0
        %456 = vmatprep.subr.mxu0 0.0
        %457 = vmatpush1.msra.mxu0 0.0
        %458 = vmatprep.subr.mxu0 0.0
        %459 = vmatpush1.msra.mxu0 0.0
        %460 = vmatprep.subr.mxu0 0.0
        %461 = vmatpush1.msra.mxu0 0.0
        %462 = vmatprep.subr.mxu0 0.0
        %463 = vmatpush1.msra.mxu0 0.0
        %464 = vmatprep.subr.mxu0 0.0
        %465 = vmatpush1.msra.mxu0 0.0
        %466 = vmatprep.subr.mxu0 0.0
        %467 = vmatpush1.msra.mxu0 0.0
        %468 = vmatprep.subr.mxu0 0.0
        %469 = vmatpush1.msra.mxu0 0.0
        %470 = vmatprep.subr.mxu0 0.0
        %471 = vmatpush1.msra.mxu0 0.0
        %472 = vmatprep.subr.mxu0 0.0
        %473 = vmatpush1.msra.mxu0 0.0
        %474 = vmatprep.mubr.f32.mxu0 0.0
        %475 = vmatmul.mubr.f32.gmra.mrb[0].mxu0 %v265
        %v476 = vpop.f32.mrb[0].mxu0
        %v477 = vadd.f32 0.0, %v476
        %v478 = vpop.f32.mrb[0].mxu0
        %v479 = vadd.f32 0.0, %v478
        %480 = vmatprep.mubr.f32.mxu0 0.0
        %481 = vmatmul.mubr.f32.gmra.mrb[0].mxu0 %v268
        %v482 = vpop.f32.mrb[0].mxu0
        %v483 = vadd.f32 0.0, %v482
        %v484 = vpop.f32.mrb[0].mxu0
        %v485 = vadd.f32 0.0, %v484
        %486 = vmatprep.mubr.f32.mxu0 0.0
        %487 = vmatmul.mubr.f32.gmra.mrb[0].mxu0 %v271
        %v488 = vpop.f32.mrb[0].mxu0
        %v489 = vadd.f32 0.0, %v488
        %v490 = vpop.f32.mrb[0].mxu0
        %v491 = vadd.f32 0.0, %v490
        %492 = vmatprep.mubr.f32.mxu0 0.0
        %493 = vmatmul.mubr.f32.gmra.mrb[0].mxu0 %v274
        %v494 = vpop.f32.mrb[0].mxu0
        %v495 = vadd.f32 0.0, %v494
        %v496 = vpop.f32.mrb[0].mxu0
        %v497 = vadd.f32 0.0, %v496
        %498 = vmatprep.mubr.f32.mxu0 0.0
        %499 = vmatmul.mubr.f32.gmra.mrb[0].mxu0 %v277
        %v500 = vpop.f32.mrb[0].mxu0
        %v501 = vadd.f32 0.0, %v500
        %v502 = vpop.f32.mrb[0].mxu0
        %v503 = vadd.f32 0.0, %v502
        %504 = vmatprep.mubr.f32.mxu0 0.0
        %505 = vmatmul.mubr.f32.gmra.mrb[0].mxu0 %v280
        %v506 = vpop.f32.mrb[0].mxu0
        %v507 = vadd.f32 0.0, %v506
        %v508 = vpop.f32.mrb[0].mxu0
        %v509 = vadd.f32 0.0, %v508
        %510 = vmatprep.mubr.f32.mxu0 0.0
        %511 = vmatmul.mubr.f32.gmra.mrb[0].mxu0 %v283
        %v512 = vpop.f32.mrb[0].mxu0
        %v513 = vadd.f32 0.0, %v512
        %v514 = vpop.f32.mrb[0].mxu0
        %v515 = vadd.f32 0.0, %v514
        %516 = vmatprep.mubr.f32.mxu0 0.0
        %517 = vmatmul.mubr.f32.gmra.mrb[0].mxu0 %v286
        %v518 = vpop.f32.mrb[0].mxu0
        %v519 = vadd.f32 0.0, %v518
        %v520 = vpop.f32.mrb[0].mxu0
        %v521 = vadd.f32 0.0, %v520
        %522 = vmatprep.mubr.f32.mxu0 0.0
        %523 = vmatmul.mubr.f32.gmra.mrb[0].mxu0 %v289
        %v524 = vpop.f32.mrb[0].mxu0
        %v525 = vadd.f32 0.0, %v524
        %v526 = vpop.f32.mrb[0].mxu0
        %v527 = vadd.f32 0.0, %v526
        %528 = vdwg.mxu0
        %529 = vst [vmem:[%s219] sm:$0xff] %v358
        %530 = vst [vmem:[%s219 + $0x8] sm:$0xff] %v360
        %531 = vst [vmem:[%s219 + $0x10] sm:$0xff] %v477
        %532 = vst [vmem:[%s219 + $0x18] sm:$0xff] %v479
        %533 = vst [vmem:[%s219 + $0x20] sm:$0xff] %v364
        %534 = vst [vmem:[%s219 + $0x28] sm:$0xff] %v366
        %535 = vst [vmem:[%s219 + $0x30] sm:$0xff] %v483
        %536 = vst [vmem:[%s219 + $0x38] sm:$0xff] %v485
        %537 = vst [vmem:[%s219 + $0x40] sm:$0xff] %v370
        %538 = vst [vmem:[%s219 + $0x48] sm:$0xff] %v372
        %539 = vst [vmem:[%s219 + $0x50] sm:$0xff] %v489
        %540 = vst [vmem:[%s219 + $0x58] sm:$0xff] %v491
        %541 = vst [vmem:[%s219 + $0x60] sm:$0xff] %v376
        %542 = vst [vmem:[%s219 + $0x68] sm:$0xff] %v378
        %543 = vst [vmem:[%s219 + $0x70] sm:$0xff] %v495
        %544 = vst [vmem:[%s219 + $0x78] sm:$0xff] %v497
        %545 = vst [vmem:[%s219 + $0x80] sm:$0xff] %v382
        %546 = vst [vmem:[%s219 + $0x88] sm:$0xff] %v384
        %547 = vst [vmem:[%s219 + $0x90] sm:$0xff] %v501
        %548 = vst [vmem:[%s219 + $0x98] sm:$0xff] %v503
        %549 = vst [vmem:[%s219 + $0xa0] sm:$0xff] %v388
        %550 = vst [vmem:[%s219 + $0xa8] sm:$0xff] %v390
        %551 = vst [vmem:[%s219 + $0xb0] sm:$0xff] %v507
        %552 = vst [vmem:[%s219 + $0xb8] sm:$0xff] %v509
        %553 = vst [vmem:[%s219 + $0xc0] sm:$0xff] %v394
        %554 = vst [vmem:[%s219 + $0xc8] sm:$0xff] %v396
        %555 = vst [vmem:[%s219 + $0xd0] sm:$0xff] %v513
        %556 = vst [vmem:[%s219 + $0xd8] sm:$0xff] %v515
        %557 = vst [vmem:[%s219 + $0xe0] sm:$0xff] %v400
        %558 = vst [vmem:[%s219 + $0xe8] sm:$0xff] %v402
        %559 = vst [vmem:[%s219 + $0xf0] sm:$0xff] %v519
        %560 = vst [vmem:[%s219 + $0xf8] sm:$0xff] %v521
        %561 = vst [vmem:[%s219 + $0x100] sm:$0xff] %v406
        %562 = vst [vmem:[%s219 + $0x108] sm:$0xff] %v408
        %563 = vst [vmem:[%s219 + $0x110] sm:$0xff] %v525
        %564 = vst [vmem:[%s219 + $0x118] sm:$0xff] %v527
        %s565 = sand.u32 %s68, 1
        %s566 = sand.u32 %s68, 1
        %s567 = smul.addr %s566, 288
        %s568 = scalar_lea.vmem [#allocation3], %s567
        // Predicated region
        $region52: #{stft_forward.1} parent=46 // pred_check
          %p569 = pneg %p78
        $region53: #{stft_forward.1} parent=46 // pred_check_branch
          %571 = sbr.rel (%p569) target = $region55
        $region54: #{stft_forward.1} parent=46 // pred_region
          %s572 = smul.u32 4, %s13
          %s573 = smul.addr %s572, 8
          %s574 = scalar_lea.vmem %s2, %s573
          // Predicated region
          $region56: #{stft_forward.1} parent=54 // pred_check
            _
          $region57: #{stft_forward.1} parent=54 // pred_check_branch
            %576 = sbr.rel (0) target = $region59
          $region58: #{stft_forward.1} parent=54 // pred_region
            // Predicated region
            $region60: #{stft_forward.1} parent=58 // pred_check
              _
            $region61: #{stft_forward.1} parent=58 // pred_check_branch
              %578 = sbr.rel (0) target = $region63
            $region62: #{stft_forward.1} parent=58 // pred_region
              loop: start=0, step=1, limit=1
              $region64: #{stft_forward.1} parent=62 // loop_pre_header
                _
              $region65: #{stft_forward.1} parent=62 // loop_header
                %s580 = sphi 0, %s584
                %p581 = scmp.ge.s32.totalorder %s580, 1
                %s585 = sphi %s568, %s568
                %s586 = sphi %s574, %s574
              $region66: #{stft_forward.1} parent=62 // loop_header_branch
                %583 = sbr.rel (%p581) target = $region70
              $region67: #{stft_forward.1} parent=62 // loop_body
                %v587 = vld [vmem:[%s585] sm:$0xff]
                %588 = vst [vmem:[%s586] sm:$0xff] %v587
                %v589 = vld [vmem:[%s585 + $0x8] sm:$0xff]
                %590 = vst [vmem:[%s586 + $0x8] sm:$0xff] %v589
                %v591 = vld [vmem:[%s585 + $0x10] sm:$0xff]
                %592 = vst [vmem:[%s586 + $0x10] sm:$0xff] %v591
                %v593 = vld [vmem:[%s585 + $0x18] sm:$0xff]
                %594 = vst [vmem:[%s586 + $0x18] sm:$0xff] %v593
                %v595 = vld [vmem:[%s585 + $0x20] sm:$0xff]
                %596 = vst [vmem:[%s586 + $0x40] sm:$0xff] %v595
                %v597 = vld [vmem:[%s585 + $0x28] sm:$0xff]
                %598 = vst [vmem:[%s586 + $0x48] sm:$0xff] %v597
                %v599 = vld [vmem:[%s585 + $0x30] sm:$0xff]
                %600 = vst [vmem:[%s586 + $0x50] sm:$0xff] %v599
                %v601 = vld [vmem:[%s585 + $0x38] sm:$0xff]
                %602 = vst [vmem:[%s586 + $0x58] sm:$0xff] %v601
                %v603 = vld [vmem:[%s585 + $0x40] sm:$0xff]
                %604 = vst [vmem:[%s586 + $0x80] sm:$0xff] %v603
                %v605 = vld [vmem:[%s585 + $0x48] sm:$0xff]
                %606 = vst [vmem:[%s586 + $0x88] sm:$0xff] %v605
                %v607 = vld [vmem:[%s585 + $0x50] sm:$0xff]
                %608 = vst [vmem:[%s586 + $0x90] sm:$0xff] %v607
                %v609 = vld [vmem:[%s585 + $0x58] sm:$0xff]
                %610 = vst [vmem:[%s586 + $0x98] sm:$0xff] %v609
                %v611 = vld [vmem:[%s585 + $0x60] sm:$0xff]
                %612 = vst [vmem:[%s586 + $0xc0] sm:$0xff] %v611
                %v613 = vld [vmem:[%s585 + $0x68] sm:$0xff]
                %614 = vst [vmem:[%s586 + $0xc8] sm:$0xff] %v613
                %v615 = vld [vmem:[%s585 + $0x70] sm:$0xff]
                %616 = vst [vmem:[%s586 + $0xd0] sm:$0xff] %v615
                %v617 = vld [vmem:[%s585 + $0x78] sm:$0xff]
                %618 = vst [vmem:[%s586 + $0xd8] sm:$0xff] %v617
                %v619 = vld [vmem:[%s585 + $0x80] sm:$0xff]
                %620 = vst [vmem:[%s586 + $0x100] sm:$0xff] %v619
                %v621 = vld [vmem:[%s585 + $0x88] sm:$0xff]
                %622 = vst [vmem:[%s586 + $0x108] sm:$0xff] %v621
                %v623 = vld [vmem:[%s585 + $0x90] sm:$0xff]
                %624 = vst [vmem:[%s586 + $0x110] sm:$0xff] %v623
                %v625 = vld [vmem:[%s585 + $0x98] sm:$0xff]
                %626 = vst [vmem:[%s586 + $0x118] sm:$0xff] %v625
                %v627 = vld [vmem:[%s585 + $0xa0] sm:$0xff]
                %628 = vst [vmem:[%s586 + $0x140] sm:$0xff] %v627
                %v629 = vld [vmem:[%s585 + $0xa8] sm:$0xff]
                %630 = vst [vmem:[%s586 + $0x148] sm:$0xff] %v629
                %v631 = vld [vmem:[%s585 + $0xb0] sm:$0xff]
                %632 = vst [vmem:[%s586 + $0x150] sm:$0xff] %v631
                %v633 = vld [vmem:[%s585 + $0xb8] sm:$0xff]
                %634 = vst [vmem:[%s586 + $0x158] sm:$0xff] %v633
                %v635 = vld [vmem:[%s585 + $0xc0] sm:$0xff]
                %636 = vst [vmem:[%s586 + $0x180] sm:$0xff] %v635
                %v637 = vld [vmem:[%s585 + $0xc8] sm:$0xff]
                %638 = vst [vmem:[%s586 + $0x188] sm:$0xff] %v637
                %v639 = vld [vmem:[%s585 + $0xd0] sm:$0xff]
                %640 = vst [vmem:[%s586 + $0x190] sm:$0xff] %v639
                %v641 = vld [vmem:[%s585 + $0xd8] sm:$0xff]
                %642 = vst [vmem:[%s586 + $0x198] sm:$0xff] %v641
                %v643 = vld [vmem:[%s585 + $0xe0] sm:$0xff]
                %644 = vst [vmem:[%s586 + $0x1c0] sm:$0xff] %v643
                %v645 = vld [vmem:[%s585 + $0xe8] sm:$0xff]
                %646 = vst [vmem:[%s586 + $0x1c8] sm:$0xff] %v645
                %v647 = vld [vmem:[%s585 + $0xf0] sm:$0xff]
                %648 = vst [vmem:[%s586 + $0x1d0] sm:$0xff] %v647
                %v649 = vld [vmem:[%s585 + $0xf8] sm:$0xff]
                %650 = vst [vmem:[%s586 + $0x1d8] sm:$0xff] %v649
                %v651 = vld [vmem:[%s585 + $0x100] sm:$0xff]
                %652 = vst [vmem:[%s586 + $0x200] sm:$0xff] %v651
                %v653 = vld [vmem:[%s585 + $0x108] sm:$0xff]
                %654 = vst [vmem:[%s586 + $0x208] sm:$0xff] %v653
                %v655 = vld [vmem:[%s585 + $0x110] sm:$0xff]
                %656 = vst [vmem:[%s586 + $0x210] sm:$0xff] %v655
                %v657 = vld [vmem:[%s585 + $0x118] sm:$0xff]
                %658 = vst [vmem:[%s586 + $0x218] sm:$0xff] %v657
              $region68: #{stft_forward.1} parent=62 // loop_footer
                %s584 = sadd.s32 1, %s580
              $region69: #{stft_forward.1} parent=62 // loop_footer_branch
                %579 = sbr.rel target = $region65
              $region70: #{stft_forward.1} parent=62 // loop_exit
                _
            $region63: #{stft_forward.1} parent=58 // pred_fallthru
              _
            // Predicated region
            $region71: #{stft_forward.1} parent=58 // pred_check
              _
            $region72: #{stft_forward.1} parent=58 // pred_check_branch
              %660 = sbr.rel target = $region74
            $region73: #{stft_forward.1} parent=58 // pred_region
              _
            $region74: #{stft_forward.1} parent=58 // pred_fallthru
              _
          $region59: #{stft_forward.1} parent=54 // pred_fallthru
            _
          %661 = vnop
        $region55: #{stft_forward.1} parent=46 // pred_fallthru
          _
      $region47: #{stft_forward.1} parent=5 // pred_fallthru
        _
      %p662 = scmp.le.s32.totalorder 2, %s8
      // Predicated region
      $region75: #{stft_forward.1} parent=5 // pred_check
        %p663 = pneg %p662
      $region76: #{stft_forward.1} parent=5 // pred_check_branch
        %665 = sbr.rel (%p663) target = $region78
      $region77: #{stft_forward.1} parent=5 // pred_region
        %s666 = ssub.s32 %s8, 2
        // Predicated region
        $region79: #{stft_forward.1} parent=77 // pred_check
          %p667 = pneg %p84
        $region80: #{stft_forward.1} parent=77 // pred_check_branch
          %669 = sbr.rel (%p667) target = $region82
        $region81: #{stft_forward.1} parent=77 // pred_region
          %s670 = sand.u32 %s69, 1
          %s671 = sand.u32 %s69, 1
          %s672 = smul.addr %s671, 288
          %s673 = scalar_lea.vmem [#allocation3], %s672
        $region82: #{stft_forward.1} parent=77 // pred_fallthru
          _
      $region78: #{stft_forward.1} parent=5 // pred_fallthru
        _
    $region6: #{stft_forward.1} parent=1 // loop_footer
      %s12 = sadd.s32 1, %s8
    $region7: #{stft_forward.1} parent=1 // loop_footer_branch
      %7 = sbr.rel target = $region3
    $region8: #{stft_forward.1} parent=1 // loop_exit
      _

</llo_original>
